<compile_context>
chip_gen: v7x
topology: tpu7x:2x2x1
jax: 0.10.0
libtpu: 0.0.40
codegen_flags: <defaults>
</compile_context>

<pallas_src>
import functools

import jax
import jax.numpy as jnp
import numpy as np
from jax import lax
from jax.experimental import pallas as pl
from jax.experimental.pallas import tpu as pltpu


def _conv2d_im2col_kernel(x_ref, w_ref, b_ref, o_ref, a_ref, *, NB, H, Ho, KH, WC, pad):
    # x_ref : (NB, H, W*Cin)        unpadded NHWC images, lane = (w, ci)
    # w_ref : (KH*W*Cin, Wo*Cout)   folded weight slab (kw shift + pad + Cin->Cout; kh on K)
    # b_ref : (1, Wo*Cout)          lane-dense bias
    # o_ref : (NB*Ho, Wo*Cout)      lane-dense output rows (all 128 lanes used per store)
    # a_ref : (NB*Ho, KH*W*Cin)     im2col scratch, dtype follows the input
    for n in range(NB):                        # static unroll (NB is small)
        base = n * Ho
        for kh in range(KH):                   # static unroll (KH = 3)
            lo = max(0, pad - kh)              # first output row whose tap kh hits real data
            hi = min(Ho, H + pad - kh)         # one past the last such row
            col = kh * WC
            if lo > 0:                         # top halo -> structural zeros only
                a_ref[base:base + lo, col:col + WC] = jnp.zeros((lo, WC), a_ref.dtype)
            if hi < Ho:                        # bottom halo -> structural zeros only
                a_ref[base + hi:base + Ho, col:col + WC] = jnp.zeros((Ho - hi, WC), a_ref.dtype)
            if hi > lo:                        # interior rows: plain sublane-offset copy
                a_ref[base + lo:base + hi, col:col + WC] = x_ref[n, lo + kh - pad:hi + kh - pad, :]
    # one MXU matmul for the whole block: (NB*Ho, KH*W*Cin) x (KH*W*Cin, Wo*Cout)
    acc = jnp.dot(a_ref[...], w_ref[...], preferred_element_type=jnp.float32)
    o_ref[...] = (acc + b_ref[...].astype(jnp.float32)).astype(o_ref.dtype)


def conv2d_pallas(x_nchw, w_oihw, bias, *, stride=1, padding=1, dilation=1, groups=1):
    if stride != 1 or dilation != 1 or groups != 1:
        raise NotImplementedError("conv2d_pallas: only stride=1, dilation=1, groups=1")

    N, Cin, H, W = x_nchw.shape
    Cout, Cin_w, KH, KW = w_oihw.shape
    assert Cin == Cin_w

    Ho = H + 2 * padding - KH + 1
    Wo = W + 2 * padding - KW + 1
    WC = W * Cin
    K = KH * WC
    OC = Wo * Cout

    # ---- weight prep (tiny, one-time): fold kw shift + W-side zero padding + the
    # Cin->Cout contraction into one dense (KH*W*Cin, Wo*Cout) slab, kh stacked along K.
    # wmat[kh*WC + wp*Cin + ci, w*Cout + c] = weight[c, ci, kh, wp - w + padding] (0 if OOB)
    w_hwio = jnp.transpose(w_oihw, (2, 3, 1, 0))                   # (KH, KW, Cin, Cout)
    sel = np.zeros((KW, W, Wo), dtype=np.float32)
    for kw in range(KW):
        for w in range(Wo):
            wp = w + kw - padding
            if 0 <= wp < W:
                sel[kw, wp, w] = 1.0
    wmat = jnp.einsum("kpw,hkic->hpiwc", jnp.asarray(sel, w_oihw.dtype), w_hwio)
    wmat = wmat.reshape(K, OC)

    # lane-dense bias: b_dense[0, w*Cout + c] = bias[c]
    b_dense = jnp.tile(bias, (Wo,)).reshape(1, OC)

    # ---- input: single NCHW->NHWC pass, then free reshape to (N, H, W*Cin).
    # (NCHW in/out is part of the module contract.)
    x2d = jnp.transpose(x_nchw, (0, 2, 3, 1)).reshape(N, H, WC)

    # ---- batch blocking: pack as many batch elements per grid step as a small VMEM
    # budget (and a sane static-unroll depth) allows. For the test shape NB == N, so the
    # whole conv is one grid step (no per-step overhead, one big matmul).
    dt_bytes = jnp.dtype(x2d.dtype).itemsize
    per_batch = (H * WC + Ho * K + Ho * OC) * dt_bytes * 2        # ~double-buffered
    NB = max(1, min(N, 8, (16 * 1024 * 1024) // max(per_batch, 1)))
    while N % NB:
        NB -= 1

    kernel = functools.partial(_conv2d_im2col_kernel,
                               NB=NB, H=H, Ho=Ho, KH=KH, WC=WC, pad=padding)

    out2d = pl.pallas_call(
        kernel,
        out_shape=jax.ShapeDtypeStruct((N * Ho, OC), x_nchw.dtype),
        grid_spec=pltpu.PrefetchScalarGridSpec(
            num_scalar_prefetch=0,
            grid=(N // NB,),
            in_specs=[
                pl.BlockSpec((NB, H, WC), lambda g: (g, 0, 0)),
                pl.BlockSpec((K, OC), lambda g: (0, 0)),
                pl.BlockSpec((1, OC), lambda g: (0, 0)),
            ],
            out_specs=pl.BlockSpec((NB * Ho, OC), lambda g: (g, 0)),
            scratch_shapes=[pltpu.VMEM((NB * Ho, K), x2d.dtype)],
        ),
        compiler_params=pltpu.CompilerParams(
            dimension_semantics=("parallel",)),
    )(x2d, wmat, b_dense)

    # free reshape of the packed lanes + single transpose back to NCHW
    return jnp.transpose(out2d.reshape(N, Ho, Wo, Cout), (0, 3, 1, 2))


if __name__ == "__main__":
    # Conv2d(in_channels=4, out_channels=8, kernel_size=3, stride=1, padding=1)
    N, Cin, H, W = 2, 4, 16, 16
    Cout, KH, KW = 8, 3, 3

    key = jax.random.PRNGKey(0)
    kx, kwt, kb = jax.random.split(key, 3)
    x = jax.random.normal(kx, (N, Cin, H, W), dtype=jnp.float32)
    fan_in = Cin * KH * KW
    bound = 1.0 / np.sqrt(fan_in)
    weight = jax.random.uniform(kwt, (Cout, Cin, KH, KW),
                                minval=-bound, maxval=bound, dtype=jnp.float32)
    bias = jax.random.uniform(kb, (Cout,), minval=-bound, maxval=bound,
                              dtype=jnp.float32)

    out = conv2d_pallas(x, weight, bias, stride=1, padding=1)
    out = jax.block_until_ready(out)

    # reference check against XLA conv (same semantics as torch.nn.Conv2d)
    ref = lax.conv_general_dilated(
        x, weight, window_strides=(1, 1), padding=((1, 1), (1, 1)),
        dimension_numbers=("NCHW", "OIHW", "NCHW")) + bias[None, :, None, None]
    np.testing.assert_allclose(np.asarray(out), np.asarray(ref),
                               rtol=1e-4, atol=1e-4)

    print("KERNEL_OK")
</pallas_src>

<mosaic_0001>
module attributes {stable_mosaic.version = 11 : i64} {
  func.func @_conv2d_im2col_kernel(%arg0: i32, %arg1: memref<2x16x64xf32, #tpu.memory_space<vmem>>, %arg2: memref<192x128xf32, #tpu.memory_space<vmem>>, %arg3: memref<1x128xf32, #tpu.memory_space<vmem>>, %arg4: memref<32x128xf32, #tpu.memory_space<vmem>>, %arg5: memref<32x192xf32, #tpu.memory_space<vmem>>) attributes {dimension_semantics = [#tpu.dimension_semantics<parallel>], iteration_bounds = array<i64: 1>, scalar_prefetch = 0 : i64, scratch_operands = 1 : i64, tpu.core_type = #tpu.core_type<tc>, window_params = [{transform_indices = @transform_0, window_bounds = array<i64: 2, 16, 64>}, {pipeline_mode = #tpu.pipeline_mode<synchronous>, transform_indices = @transform_1, window_bounds = array<i64: 192, 128>}, {pipeline_mode = #tpu.pipeline_mode<synchronous>, transform_indices = @transform_2, window_bounds = array<i64: 1, 128>}, {transform_indices = @transform_3, window_bounds = array<i64: 32, 128>}]} {
    %cst = arith.constant 0.000000e+00 : f32
    %0 = vector.broadcast %cst : f32 to vector<1x64xf32>
    %c0 = arith.constant 0 : index
    %c0_0 = arith.constant 0 : index
    %1 = vector.load %arg5[%c0, %c0_0] : memref<32x192xf32, #tpu.memory_space<vmem>>, vector<1x64xf32>
    tpu.vector_store %arg5[%c0, %c0_0], %0 {strides = array<i32>} : memref<32x192xf32, #tpu.memory_space<vmem>>, vector<1x64xf32>,
    %c0_1 = arith.constant 0 : index
    %c0_2 = arith.constant 0 : index
    %c0_3 = arith.constant 0 : index
    %2 = vector.load %arg1[%c0_1, %c0_2, %c0_3] : memref<2x16x64xf32, #tpu.memory_space<vmem>>, vector<1x15x64xf32>
    %3 = vector.shape_cast %2 : vector<1x15x64xf32> to vector<15x64xf32>
    %c1 = arith.constant 1 : index
    %c0_4 = arith.constant 0 : index
    %4 = vector.load %arg5[%c1, %c0_4] : memref<32x192xf32, #tpu.memory_space<vmem>>, vector<15x64xf32>
    tpu.vector_store %arg5[%c1, %c0_4], %3 {strides = array<i32>} : memref<32x192xf32, #tpu.memory_space<vmem>>, vector<15x64xf32>,
    %c0_5 = arith.constant 0 : index
    %c0_6 = arith.constant 0 : index
    %c0_7 = arith.constant 0 : index
    %5 = vector.load %arg1[%c0_5, %c0_6, %c0_7] : memref<2x16x64xf32, #tpu.memory_space<vmem>>, vector<1x16x64xf32>
    %6 = vector.shape_cast %5 : vector<1x16x64xf32> to vector<16x64xf32>
    %c0_8 = arith.constant 0 : index
    %c64 = arith.constant 64 : index
    %7 = vector.load %arg5[%c0_8, %c64] : memref<32x192xf32, #tpu.memory_space<vmem>>, vector<16x64xf32>
    tpu.vector_store %arg5[%c0_8, %c64], %6 {strides = array<i32>} : memref<32x192xf32, #tpu.memory_space<vmem>>, vector<16x64xf32>,
    %cst_9 = arith.constant 0.000000e+00 : f32
    %8 = vector.broadcast %cst_9 : f32 to vector<1x64xf32>
    %c15 = arith.constant 15 : index
    %c128 = arith.constant 128 : index
    %9 = vector.load %arg5[%c15, %c128] : memref<32x192xf32, #tpu.memory_space<vmem>>, vector<1x64xf32>
    tpu.vector_store %arg5[%c15, %c128], %8 {strides = array<i32>} : memref<32x192xf32, #tpu.memory_space<vmem>>, vector<1x64xf32>,
    %c0_10 = arith.constant 0 : index
    %c1_11 = arith.constant 1 : index
    %c0_12 = arith.constant 0 : index
    %10 = vector.load %arg1[%c0_10, %c1_11, %c0_12] : memref<2x16x64xf32, #tpu.memory_space<vmem>>, vector<1x15x64xf32>
    %11 = vector.shape_cast %10 : vector<1x15x64xf32> to vector<15x64xf32>
    %c0_13 = arith.constant 0 : index
    %c128_14 = arith.constant 128 : index
    %12 = vector.load %arg5[%c0_13, %c128_14] : memref<32x192xf32, #tpu.memory_space<vmem>>, vector<15x64xf32>
    tpu.vector_store %arg5[%c0_13, %c128_14], %11 {strides = array<i32>} : memref<32x192xf32, #tpu.memory_space<vmem>>, vector<15x64xf32>,
    %cst_15 = arith.constant 0.000000e+00 : f32
    %13 = vector.broadcast %cst_15 : f32 to vector<1x64xf32>
    %c16 = arith.constant 16 : index
    %c0_16 = arith.constant 0 : index
    %14 = vector.load %arg5[%c16, %c0_16] : memref<32x192xf32, #tpu.memory_space<vmem>>, vector<1x64xf32>
    tpu.vector_store %arg5[%c16, %c0_16], %13 {strides = array<i32>} : memref<32x192xf32, #tpu.memory_space<vmem>>, vector<1x64xf32>,
    %c1_17 = arith.constant 1 : index
    %c0_18 = arith.constant 0 : index
    %c0_19 = arith.constant 0 : index
    %15 = vector.load %arg1[%c1_17, %c0_18, %c0_19] : memref<2x16x64xf32, #tpu.memory_space<vmem>>, vector<1x15x64xf32>
    %16 = vector.shape_cast %15 : vector<1x15x64xf32> to vector<15x64xf32>
    %c17 = arith.constant 17 : index
    %c0_20 = arith.constant 0 : index
    %17 = vector.load %arg5[%c17, %c0_20] : memref<32x192xf32, #tpu.memory_space<vmem>>, vector<15x64xf32>
    tpu.vector_store %arg5[%c17, %c0_20], %16 {strides = array<i32>} : memref<32x192xf32, #tpu.memory_space<vmem>>, vector<15x64xf32>,
    %c1_21 = arith.constant 1 : index
    %c0_22 = arith.constant 0 : index
    %c0_23 = arith.constant 0 : index
    %18 = vector.load %arg1[%c1_21, %c0_22, %c0_23] : memref<2x16x64xf32, #tpu.memory_space<vmem>>, vector<1x16x64xf32>
    %19 = vector.shape_cast %18 : vector<1x16x64xf32> to vector<16x64xf32>
    %c16_24 = arith.constant 16 : index
    %c64_25 = arith.constant 64 : index
    %20 = vector.load %arg5[%c16_24, %c64_25] : memref<32x192xf32, #tpu.memory_space<vmem>>, vector<16x64xf32>
    tpu.vector_store %arg5[%c16_24, %c64_25], %19 {strides = array<i32>} : memref<32x192xf32, #tpu.memory_space<vmem>>, vector<16x64xf32>,
    %cst_26 = arith.constant 0.000000e+00 : f32
    %21 = vector.broadcast %cst_26 : f32 to vector<1x64xf32>
    %c31 = arith.constant 31 : index
    %c128_27 = arith.constant 128 : index
    %22 = vector.load %arg5[%c31, %c128_27] : memref<32x192xf32, #tpu.memory_space<vmem>>, vector<1x64xf32>
    tpu.vector_store %arg5[%c31, %c128_27], %21 {strides = array<i32>} : memref<32x192xf32, #tpu.memory_space<vmem>>, vector<1x64xf32>,
    %c1_28 = arith.constant 1 : index
    %c1_29 = arith.constant 1 : index
    %c0_30 = arith.constant 0 : index
    %23 = vector.load %arg1[%c1_28, %c1_29, %c0_30] : memref<2x16x64xf32, #tpu.memory_space<vmem>>, vector<1x15x64xf32>
    %24 = vector.shape_cast %23 : vector<1x15x64xf32> to vector<15x64xf32>
    %c16_31 = arith.constant 16 : index
    %c128_32 = arith.constant 128 : index
    %25 = vector.load %arg5[%c16_31, %c128_32] : memref<32x192xf32, #tpu.memory_space<vmem>>, vector<15x64xf32>
    tpu.vector_store %arg5[%c16_31, %c128_32], %24 {strides = array<i32>} : memref<32x192xf32, #tpu.memory_space<vmem>>, vector<15x64xf32>,
    %c0_33 = arith.constant 0 : index
    %c0_34 = arith.constant 0 : index
    %26 = vector.load %arg5[%c0_33, %c0_34] : memref<32x192xf32, #tpu.memory_space<vmem>>, vector<32x192xf32>
    %c0_35 = arith.constant 0 : index
    %c0_36 = arith.constant 0 : index
    %27 = vector.load %arg2[%c0_35, %c0_36] : memref<192x128xf32, #tpu.memory_space<vmem>>, vector<192x128xf32>
    %cst_37 = arith.constant dense<0.000000e+00> : vector<32x128xf32>
    %28 = tpu.matmul %26, %27, %cst_37 {dimension_numbers = #tpu.dot_dimension_numbers<[1], [0], [0], [1], [0, 0, 1, 1], [], []>} : vector<32x192xf32>, vector<192x128xf32>, vector<32x128xf32> -> vector<32x128xf32>
    %c0_38 = arith.constant 0 : index
    %c0_39 = arith.constant 0 : index
    %29 = vector.load %arg3[%c0_38, %c0_39] : memref<1x128xf32, #tpu.memory_space<vmem>>, vector<1x128xf32>
    %30 = vector.broadcast %29 : vector<1x128xf32> to vector<32x128xf32>
    %31 = arith.addf %28, %30 : vector<32x128xf32>
    %c0_40 = arith.constant 0 : index
    %c0_41 = arith.constant 0 : index
    %32 = vector.load %arg4[%c0_40, %c0_41] : memref<32x128xf32, #tpu.memory_space<vmem>>, vector<32x128xf32>
    tpu.vector_store %arg4[%c0_40, %c0_41], %31 {strides = array<i32>} : memref<32x128xf32, #tpu.memory_space<vmem>>, vector<32x128xf32>,
    return
  }
  func.func @transform_0(%arg0: i32) -> (i32, i32, i32) {
    %c0_i32 = arith.constant 0 : i32
    %c0_i32_0 = arith.constant 0 : i32
    %c0_i32_1 = arith.constant 0 : i32
    return %arg0, %c0_i32, %c0_i32_0 : i32, i32, i32
  }
  func.func @transform_1(%arg0: i32) -> (i32, i32) {
    %c0_i32 = arith.constant 0 : i32
    %c0_i32_0 = arith.constant 0 : i32
    %c0_i32_1 = arith.constant 0 : i32
    return %c0_i32, %c0_i32_0 : i32, i32
  }
  func.func @transform_2(%arg0: i32) -> (i32, i32) {
    %c0_i32 = arith.constant 0 : i32
    %c0_i32_0 = arith.constant 0 : i32
    %c0_i32_1 = arith.constant 0 : i32
    return %c0_i32, %c0_i32_0 : i32, i32
  }
  func.func @transform_3(%arg0: i32) -> (i32, i32) {
    %c0_i32 = arith.constant 0 : i32
    %c0_i32_0 = arith.constant 0 : i32
    return %arg0, %c0_i32 : i32, i32
  }
}

</mosaic_0001>

<llo_original>
// kernel: tpu_custom_call.1
$region0: #{tpu_custom_call.1}
  #allocation0 [shape = 'u32[]', space=smem, size = 0x4, offset = 0x4, fixed_abs, tag = 'smem constant byte address 0x4 - core index']
  #allocation1 [shape = 'u32[144,128]{1,0:T(1,128)}', space=vmem, size = 0x12000, scoped, tag = 'internal scratch']
  #allocation2 [shape = 'f32[32,192]{1,0:T(8,128)}', space=vmem, size = 0x8000, scoped, tag = 'scratch operand']
  %s0 = inlined_call_operand.hbm [shape: f32[2,16,64], index: 0, kind: input, shape index: {}]
  %s1 = inlined_call_operand.hbm [shape: f32[192,128], index: 1, kind: input, shape index: {}]
  %s2 = inlined_call_operand.vmem [shape: f32[1,128], index: 2, kind: input, shape index: {}]
  %s3 = inlined_call_operand.hbm [shape: f32[32,128], index: 3, kind: output, shape index: {}]
  %s4 = sld [smem:[#allocation0]]
  $region30: #{tpu_custom_call.1} parent=0
    _
  %s6 = ssub.s32 1, %s4
  %s7 = scalar_select 0, %s6, %s4
  $region1: #{tpu_custom_call.1} parent=0
    #allocation3 [shape = 'u8[16384]{0}', space=vmem, size = 0x4000, scoped, tag = 'input window, operand 0, single buffered']
    #allocation4 [shape = 's32[1]{0}', space=sflag, size = 0x4, scoped, tag = 'scoped memory for tpu_custom_call.1']
    #allocation5 [shape = 's32[1]{0}', space=sflag, size = 0x4, scoped, tag = 'scoped memory for tpu_custom_call.1']
    #allocation6 [shape = 'u8[98304]{0}', space=vmem, size = 0x18000, scoped, tag = 'input window, operand 1, single buffered']
    #allocation7 [shape = 's32[1]{0}', space=sflag, size = 0x4, scoped, tag = 'scoped memory for tpu_custom_call.1']
    #allocation8 [shape = 'u8[16384]{0}', space=vmem, size = 0x4000, scoped, tag = 'output window, operand 0, single buffered']
    %8 = vsyncpa [#allocation4], 0
    %9 = vsyncpa [#allocation7], 0
    %10 = vsyncpa [#allocation5], 0
    // Predicated region
    $region2: #{tpu_custom_call.1} parent=1 // pred_check
      _
    $region3: #{tpu_custom_call.1} parent=1 // pred_check_branch
      %12 = sbr.rel (0) target = $region5
    $region4: #{tpu_custom_call.1} parent=1 // pred_region
      %s14 = ssub.s32 512, 512
      %15 = vsyncadd [#allocation4], %s14
      %s16 = sshll.u32 [#allocation3], 4
      %s17 = int_to_ptr.vmem [resolvable:$true] %s16
      %22 = dma.hbm_to_vmem [thread:$0]  %s0, 512, %s17, [#allocation4], 128, 128, 8
    $region5: #{tpu_custom_call.1} parent=1 // pred_fallthru
      _
    // Predicated region
    $region6: #{tpu_custom_call.1} parent=1 // pred_check
      _
    $region7: #{tpu_custom_call.1} parent=1 // pred_check_branch
      %24 = sbr.rel (0) target = $region9
    $region8: #{tpu_custom_call.1} parent=1 // pred_region
      %s26 = ssub.s32 3072, 3072
      %27 = vsyncadd [#allocation7], %s26
      %s28 = sshll.u32 [#allocation6], 4
      %s29 = int_to_ptr.vmem [resolvable:$true] %s28
      %34 = dma.hbm_to_vmem [thread:$0]  %s1, 3072, %s29, [#allocation7], 128, 128, 8
    $region9: #{tpu_custom_call.1} parent=1 // pred_fallthru
      _
    // Predicated region
    $region10: #{tpu_custom_call.1} parent=1 // pred_check
      _
    $region11: #{tpu_custom_call.1} parent=1 // pred_check_branch
      %36 = sbr.rel (0) target = $region13
    $region12: #{tpu_custom_call.1} parent=1 // pred_region
      _
    $region13: #{tpu_custom_call.1} parent=1 // pred_fallthru
      _
    // Predicated region
    $region14: #{tpu_custom_call.1} parent=1 // pred_check
      _
    $region15: #{tpu_custom_call.1} parent=1 // pred_check_branch
      %38 = sbr.rel (0) target = $region17
    $region16: #{tpu_custom_call.1} parent=1 // pred_region
      %39 = dma.done [#allocation4], 512
    $region17: #{tpu_custom_call.1} parent=1 // pred_fallthru
      _
    // Predicated region
    $region18: #{tpu_custom_call.1} parent=1 // pred_check
      _
    $region19: #{tpu_custom_call.1} parent=1 // pred_check_branch
      %41 = sbr.rel (0) target = $region21
    $region20: #{tpu_custom_call.1} parent=1 // pred_region
      %42 = dma.done [#allocation7], 3072
    $region21: #{tpu_custom_call.1} parent=1 // pred_fallthru
      _
    %vm43 = vcmask 516096
    %44 = vst.msk [vmem:[#allocation2] sm:$0x1] %vm43, 0.0
    %v45 = vld [vmem:[#allocation3] sm:$0xff]
    %v46 = vld [vmem:[#allocation3 + $0x8] sm:$0x7f]
    %vm49 = vcmask 1040384
    %v50 = vrot.slane %v45, 7
    %v51 = vrot.slane %v46, 7
    %v52 = vsel %vm49, %v50, %v51
    %vm55 = vcmask 523265
    %56 = vst.msk [vmem:[#allocation2] sm:$0xfe] %vm55, %v50
    %vm57 = vcmask 523264
    %58 = vst.msk [vmem:[#allocation2 + $0x10] sm:$0xff] %vm57, %v52
    %v59 = vld [vmem:[#allocation3] sm:$0xff]
    %v60 = vld [vmem:[#allocation3 + $0x8] sm:$0xff]
    %63 = vrot.lane.b32.xlu0 %v59, 64
    %v64 = vpop.permute.xlu0 %63
    %65 = vrot.lane.b32.xlu0 %v60, 64
    %v66 = vpop.permute.xlu0 %65
    %vm69 = vcmask 1048064
    %70 = vst.msk [vmem:[#allocation2] sm:$0xff] %vm69, %v64
    %71 = vst.msk [vmem:[#allocation2 + $0x10] sm:$0xff] %vm69, %v66
    %72 = vst.msk [vmem:[#allocation2 + $0x1f] sm:$0x1] %vm43, 0.0
    %v73 = vld [vmem:[#allocation3 + $0x1] sm:$0xff]
    %v74 = vld [vmem:[#allocation3 + $0x9] sm:$0x7f]
    %75 = vst.msk [vmem:[#allocation2 + $0x8] sm:$0xff] %vm57, %v73
    %vm76 = vcmask 522240
    %77 = vst.msk [vmem:[#allocation2 + $0x18] sm:$0x7f] %vm76, %v74
    %78 = vst.msk [vmem:[#allocation2 + $0x20] sm:$0x1] %vm43, 0.0
    %s79 = scalar_lea.vmem [#allocation3], 16
    %v80 = vld [vmem:[%s79] sm:$0xff]
    %v81 = vld [vmem:[%s79 + $0x8] sm:$0x7f]
    %v84 = vrot.slane %v80, 7
    %v85 = vrot.slane %v81, 7
    %v86 = vsel %vm49, %v84, %v85
    %89 = vst.msk [vmem:[#allocation2 + $0x20] sm:$0xfe] %vm55, %v84
    %90 = vst.msk [vmem:[#allocation2 + $0x30] sm:$0xff] %vm57, %v86
    %v91 = vld [vmem:[%s79] sm:$0xff]
    %v92 = vld [vmem:[%s79 + $0x8] sm:$0xff]
    %95 = vrot.lane.b32.xlu0 %v91, 64
    %v96 = vpop.permute.xlu0 %95
    %97 = vrot.lane.b32.xlu0 %v92, 64
    %v98 = vpop.permute.xlu0 %97
    %101 = vst.msk [vmem:[#allocation2 + $0x20] sm:$0xff] %vm69, %v96
    %102 = vst.msk [vmem:[#allocation2 + $0x30] sm:$0xff] %vm69, %v98
    %103 = vst.msk [vmem:[#allocation2 + $0x3f] sm:$0x1] %vm43, 0.0
    %v104 = vld [vmem:[%s79 + $0x1] sm:$0xff]
    %v105 = vld [vmem:[%s79 + $0x9] sm:$0x7f]
    %106 = vst.msk [vmem:[#allocation2 + $0x28] sm:$0xff] %vm57, %v104
    %107 = vst.msk [vmem:[#allocation2 + $0x38] sm:$0x7f] %vm76, %v105
    %v108 = vld [vmem:[#allocation2] sm:$0xff]
    %v109 = vld [vmem:[#allocation2 + $0x8] sm:$0xff]
    %v110 = vld [vmem:[#allocation2 + $0x10] sm:$0xff]
    %v111 = vld [vmem:[#allocation2 + $0x18] sm:$0xff]
    %v112 = vld [vmem:[#allocation2 + $0x20] sm:$0xff]
    %v113 = vld [vmem:[#allocation2 + $0x28] sm:$0xff]
    %v114 = vld [vmem:[#allocation2 + $0x30] sm:$0xff]
    %v115 = vld [vmem:[#allocation2 + $0x38] sm:$0xff]
    %v116 = vld [vmem:[#allocation6] sm:$0xff]
    %v117 = vld [vmem:[#allocation6 + $0x8] sm:$0xff]
    %v118 = vld [vmem:[#allocation6 + $0x10] sm:$0xff]
    %v119 = vld [vmem:[#allocation6 + $0x18] sm:$0xff]
    %v120 = vld [vmem:[#allocation6 + $0x20] sm:$0xff]
    %v121 = vld [vmem:[#allocation6 + $0x28] sm:$0xff]
    %v122 = vld [vmem:[#allocation6 + $0x30] sm:$0xff]
    %v123 = vld [vmem:[#allocation6 + $0x38] sm:$0xff]
    %v124 = vld [vmem:[#allocation6 + $0x40] sm:$0xff]
    %v125 = vld [vmem:[#allocation6 + $0x48] sm:$0xff]
    %v126 = vld [vmem:[#allocation6 + $0x50] sm:$0xff]
    %v127 = vld [vmem:[#allocation6 + $0x58] sm:$0xff]
    %v128 = vld [vmem:[#allocation6 + $0x60] sm:$0xff]
    %v129 = vld [vmem:[#allocation6 + $0x68] sm:$0xff]
    %v130 = vld [vmem:[#allocation6 + $0x70] sm:$0xff]
    %v131 = vld [vmem:[#allocation6 + $0x78] sm:$0xff]
    %v132 = vld [vmem:[#allocation6 + $0x80] sm:$0xff]
    %v133 = vld [vmem:[#allocation6 + $0x88] sm:$0xff]
    %v134 = vld [vmem:[#allocation6 + $0x90] sm:$0xff]
    %v135 = vld [vmem:[#allocation6 + $0x98] sm:$0xff]
    %v136 = vld [vmem:[#allocation6 + $0xa0] sm:$0xff]
    %v137 = vld [vmem:[#allocation6 + $0xa8] sm:$0xff]
    %v138 = vld [vmem:[#allocation6 + $0xb0] sm:$0xff]
    %v139 = vld [vmem:[#allocation6 + $0xb8] sm:$0xff]
    %v140 = vld [vmem:[%s2] sm:$0x1]
    %v142 = vlaneseq
    %v143 = vshrl.u32 %v142, 7
    %v144 = vsub.s32 0, %v143
    %v145 = vrot.slane %v140, %v144
    %v148 = vsel %vm57, %v109, 0
    %v151 = vsel %vm57, %v111, 0
    %v154 = vsel %vm57, %v113, 0
    %v157 = vsel %vm57, %v115, 0
    %159 = vmatprep.subr.mxu0 0.0
    %160 = vmatpush1.msra.mxu0 %v116
    %161 = vmatprep.subr.mxu0 0.0
    %162 = vmatpush1.msra.mxu0 %v117
    %163 = vmatprep.subr.mxu0 0.0
    %164 = vmatpush1.msra.mxu0 %v118
    %165 = vmatprep.subr.mxu0 0.0
    %166 = vmatpush1.msra.mxu0 %v119
    %167 = vmatprep.subr.mxu0 0.0
    %168 = vmatpush1.msra.mxu0 %v120
    %169 = vmatprep.subr.mxu0 0.0
    %170 = vmatpush1.msra.mxu0 %v121
    %171 = vmatprep.subr.mxu0 0.0
    %172 = vmatpush1.msra.mxu0 %v122
    %173 = vmatprep.subr.mxu0 0.0
    %174 = vmatpush1.msra.mxu0 %v123
    %175 = vmatprep.subr.mxu0 0.0
    %176 = vmatpush1.msra.mxu0 %v124
    %177 = vmatprep.subr.mxu0 0.0
    %178 = vmatpush1.msra.mxu0 %v125
    %179 = vmatprep.subr.mxu0 0.0
    %180 = vmatpush1.msra.mxu0 %v126
    %181 = vmatprep.subr.mxu0 0.0
    %182 = vmatpush1.msra.mxu0 %v127
    %183 = vmatprep.subr.mxu0 0.0
    %184 = vmatpush1.msra.mxu0 %v128
    %185 = vmatprep.subr.mxu0 0.0
    %186 = vmatpush1.msra.mxu0 %v129
    %187 = vmatprep.subr.mxu0 0.0
    %188 = vmatpush1.msra.mxu0 %v130
    %189 = vmatprep.subr.mxu0 0.0
    %190 = vmatpush1.msra.mxu0 %v131
    %191 = vmatprep.subr.mxu0 0.0
    %192 = vmatpush1.msra.mxu0 %v132
    %193 = vmatprep.subr.mxu0 0.0
    %194 = vmatpush1.msra.mxu0 %v133
    %195 = vmatprep.subr.mxu0 0.0
    %196 = vmatpush1.msra.mxu0 %v134
    %197 = vmatprep.subr.mxu0 0.0
    %198 = vmatpush1.msra.mxu0 %v135
    %199 = vmatprep.subr.mxu0 0.0
    %200 = vmatpush1.msra.mxu0 %v136
    %201 = vmatprep.subr.mxu0 0.0
    %202 = vmatpush1.msra.mxu0 %v137
    %203 = vmatprep.subr.mxu0 0.0
    %204 = vmatpush1.msra.mxu0 %v138
    %205 = vmatprep.subr.mxu0 0.0
    %206 = vmatpush1.msra.mxu0 %v139
    %207 = vmatprep.subr.mxu0 0.0
    %208 = vmatpush1.msra.mxu0 0.0
    %209 = vmatprep.subr.mxu0 0.0
    %210 = vmatpush1.msra.mxu0 0.0
    %211 = vmatprep.subr.mxu0 0.0
    %212 = vmatpush1.msra.mxu0 0.0
    %213 = vmatprep.subr.mxu0 0.0
    %214 = vmatpush1.msra.mxu0 0.0
    %215 = vmatprep.subr.mxu0 0.0
    %216 = vmatpush1.msra.mxu0 0.0
    %217 = vmatprep.subr.mxu0 0.0
    %218 = vmatpush1.msra.mxu0 0.0
    %219 = vmatprep.subr.mxu0 0.0
    %220 = vmatpush1.msra.mxu0 0.0
    %221 = vmatprep.subr.mxu0 0.0
    %222 = vmatpush1.msra.mxu0 0.0
    %223 = vmatprep.mubr.f32.mxu0 %v148
    %224 = vmatmul.mubr.f32.gmra.mrb[0].mxu0 %v108
    %v225 = vpop.f32.mrb[0].mxu0
    %v226 = vadd.f32 %v145, %v225
    %v227 = vpop.f32.mrb[0].mxu0
    %228 = vmatprep.mubr.f32.mxu0 %v151
    %229 = vmatmul.mubr.f32.gmra.mrb[0].mxu0 %v110
    %v230 = vpop.f32.mrb[0].mxu0
    %v231 = vadd.f32 %v145, %v230
    %v232 = vpop.f32.mrb[0].mxu0
    %233 = vmatprep.mubr.f32.mxu0 %v154
    %234 = vmatmul.mubr.f32.gmra.mrb[0].mxu0 %v112
    %v235 = vpop.f32.mrb[0].mxu0
    %v236 = vadd.f32 %v145, %v235
    %v237 = vpop.f32.mrb[0].mxu0
    %238 = vmatprep.mubr.f32.mxu0 %v157
    %239 = vmatmul.mubr.f32.gmra.mrb[0].mxu0 %v114
    %v240 = vpop.f32.mrb[0].mxu0
    %v241 = vadd.f32 %v145, %v240
    %v242 = vpop.f32.mrb[0].mxu0
    %243 = vdwg.mxu0
    %244 = vst [vmem:[#allocation8] sm:$0xff] %v226
    %245 = vst [vmem:[#allocation8 + $0x8] sm:$0xff] %v231
    %246 = vst [vmem:[#allocation8 + $0x10] sm:$0xff] %v236
    %247 = vst [vmem:[#allocation8 + $0x18] sm:$0xff] %v241
    // Predicated region
    $region22: #{tpu_custom_call.1} parent=1 // pred_check
      _
    $region23: #{tpu_custom_call.1} parent=1 // pred_check_branch
      %249 = sbr.rel (0) target = $region25
    $region24: #{tpu_custom_call.1} parent=1 // pred_region
      %s251 = ssub.s32 512, 512
      %252 = vsyncadd [#allocation5], %s251
      %s253 = sshll.u32 [#allocation8], 4
      %s254 = int_to_ptr.vmem [resolvable:$true] %s253
      %259 = dma.vmem_to_hbm [thread:$0]  %s254, 512, %s3, [#allocation5], 128, 128, 8
    $region25: #{tpu_custom_call.1} parent=1 // pred_fallthru
      _
    // Predicated region
    $region26: #{tpu_custom_call.1} parent=1 // pred_check
      _
    $region27: #{tpu_custom_call.1} parent=1 // pred_check_branch
      %261 = sbr.rel (0) target = $region29
    $region28: #{tpu_custom_call.1} parent=1 // pred_region
      %262 = dma.done [#allocation5], 512
    $region29: #{tpu_custom_call.1} parent=1 // pred_fallthru
      _
    %263 = vsyncpa [#allocation4], 1
    %264 = vsyncpa [#allocation7], 1
    %265 = vsyncpa [#allocation5], 1

</llo_original>
